<compile_context>
chip_gen: v5e
topology: v5e:2x2
jax: 0.10.0
libtpu: 0.0.40
codegen_flags: <defaults>
</compile_context>

<pallas_src>
import jax
import jax.numpy as jnp
from jax.experimental import pallas as pl
from jax.experimental.pallas import tpu as pltpu

EPS = 1e-5
LEAKY_SLOPE = 0.01  # nn.LeakyReLU() default


def _round_up(n, m):
    return (n + m - 1) // m * m


def bn_dense_kernel(x_ref,
                    wcat_ref, gcat_ref, becat_ref,
                    w2_ref, g2_ref, be2_ref,
                    o_ref):
    out_p = o_ref.shape[1]          # padded (lane-dense) feature width
    x = x_ref[...]                  # [B, in_p] f32

    def bn(h, g, b):
        # Training-mode BatchNorm1d: batch mean, biased variance, fused
        # scale/shift application on the centered tile.  Padded columns:
        # h == 0 -> c == 0 and gamma == 0 -> scale == 0, so the result is
        # exactly 0 there.
        mean = jnp.mean(h, axis=0, keepdims=True)
        c = h - mean
        var = jnp.mean(c * c, axis=0, keepdims=True)
        scale = g * jax.lax.rsqrt(var + EPS)
        return c * scale + b

    def lrelu(h):
        return jnp.where(h >= 0, h, LEAKY_SLOPE * h)

    # --- fused x-branch matmul: first net Linear + shortcut Linear ----------
    # [B, in_p] @ [in_p, 2*out_p]  (biases dropped: cancelled by BN mean)
    pre_cat = jnp.dot(x, wcat_ref[...], preferred_element_type=jnp.float32)

    # BN over the concatenated tile covers both branches at once.
    bn_cat = bn(pre_cat, gcat_ref[...], becat_ref[...])
    h1 = lrelu(bn_cat[:, :out_p])        # net branch after BN1 + LeakyReLU
    s = bn_cat[:, out_p:]                # shortcut branch (no activation)

    # --- second net Linear + BN + LeakyReLU ---------------------------------
    pre2 = jnp.dot(h1, w2_ref[...], preferred_element_type=jnp.float32)
    h2 = lrelu(bn(pre2, g2_ref[...], be2_ref[...]))

    o_ref[...] = h2 + s


def bn_dense_forward(x, params):
    """x: [B, in_dim] float32. params: dict of arrays (see init_params)."""
    B, in_dim = x.shape
    out_dim = params["w1"].shape[1]
    in_p = _round_up(in_dim, 128)
    out_p = _round_up(out_dim, 128)

    def pad2(a, rows, cols):
        return jnp.pad(a, ((0, rows - a.shape[0]), (0, cols - a.shape[1])))

    # Pack the two x-fed Linears (net layer 1 + shortcut) into one weight slab
    # and pack their BN affines the same way.  Padded gamma/beta are zero.
    w_cat = jnp.concatenate([pad2(params["w1"], in_p, out_p),
                             pad2(params["ws"], in_p, out_p)], axis=1)
    g_cat = jnp.concatenate([pad2(params["g1"], 1, out_p),
                             pad2(params["gs"], 1, out_p)], axis=1)
    be_cat = jnp.concatenate([pad2(params["be1"], 1, out_p),
                              pad2(params["bes"], 1, out_p)], axis=1)
    w2 = pad2(params["w2"], out_p, out_p)
    g2 = pad2(params["g2"], 1, out_p)
    be2 = pad2(params["be2"], 1, out_p)
    x_p = pad2(x, B, in_p)

    vmem = pl.BlockSpec(memory_space=pltpu.MemorySpace.VMEM)
    args = (x_p, w_cat, g_cat, be_cat, w2, g2, be2)

    out_padded = pl.pallas_call(
        bn_dense_kernel,
        out_shape=jax.ShapeDtypeStruct((B, out_p), jnp.float32),
        in_specs=[vmem] * len(args),
        out_specs=vmem,
    )(*args)
    return out_padded[:, :out_dim]


def init_params(key, in_dim, out_dim):
    """Deterministic init mimicking PyTorch defaults (uniform +/- 1/sqrt(fan_in))
    for Linear; BN gamma/beta made non-trivial but deterministic.
    Linear weights are stored pre-transposed as [in_dim_of_layer, out_dim]."""
    ks = jax.random.split(key, 12)

    def lin(kw, kb, fan_in, fan_out):
        bound = 1.0 / jnp.sqrt(fan_in)
        w = jax.random.uniform(kw, (fan_in, fan_out), jnp.float32, -bound, bound)
        b = jax.random.uniform(kb, (1, fan_out), jnp.float32, -bound, bound)
        return w, b

    w1, b1 = lin(ks[0], ks[1], in_dim, out_dim)
    w2, b2 = lin(ks[2], ks[3], out_dim, out_dim)
    ws, bs = lin(ks[4], ks[5], in_dim, out_dim)
    g1 = 1.0 + 0.1 * jax.random.normal(ks[6], (1, out_dim), jnp.float32)
    be1 = 0.1 * jax.random.normal(ks[7], (1, out_dim), jnp.float32)
    g2 = 1.0 + 0.1 * jax.random.normal(ks[8], (1, out_dim), jnp.float32)
    be2 = 0.1 * jax.random.normal(ks[9], (1, out_dim), jnp.float32)
    gs = 1.0 + 0.1 * jax.random.normal(ks[10], (1, out_dim), jnp.float32)
    bes = 0.1 * jax.random.normal(ks[11], (1, out_dim), jnp.float32)
    return dict(w1=w1, b1=b1, g1=g1, be1=be1,
                w2=w2, b2=b2, g2=g2, be2=be2,
                ws=ws, bs=bs, gs=gs, bes=bes)


def bn_dense_reference(x, p):
    """Pure-JAX reference of the PyTorch forward (training-mode BN, with the
    Linear biases exactly as in the nn.Module)."""
    def bn(h, g, b):
        m = jnp.mean(h, axis=0, keepdims=True)
        v = jnp.mean((h - m) ** 2, axis=0, keepdims=True)
        return g * (h - m) / jnp.sqrt(v + EPS) + b

    def lrelu(h):
        return jnp.where(h >= 0, h, LEAKY_SLOPE * h)

    h = lrelu(bn(x @ p["w1"] + p["b1"], p["g1"], p["be1"]))
    h = lrelu(bn(h @ p["w2"] + p["b2"], p["g2"], p["be2"]))
    s = bn(x @ p["ws"] + p["bs"], p["gs"], p["bes"])
    return h + s


if __name__ == "__main__":
    B, in_dim, out_dim = 8, 32, 32
    key = jax.random.PRNGKey(0)
    kx, kp = jax.random.split(key)
    x = jax.random.normal(kx, (B, in_dim), jnp.float32)
    params = init_params(kp, in_dim, out_dim)

    out = bn_dense_forward(x, params)
    out = jax.block_until_ready(out)

    ref = bn_dense_reference(x, params)
    assert out.shape == (B, out_dim)
    assert jnp.allclose(out, ref, atol=1e-4, rtol=1e-4), "mismatch vs reference"

    print("KERNEL_OK")
</pallas_src>

<mosaic_0001>
module attributes {stable_mosaic.version = 11 : i64} {
  func.func @bn_dense_kernel(%arg0: memref<8x128xf32, #tpu.memory_space<vmem>>, %arg1: memref<128x256xf32, #tpu.memory_space<vmem>>, %arg2: memref<1x256xf32, #tpu.memory_space<vmem>>, %arg3: memref<1x256xf32, #tpu.memory_space<vmem>>, %arg4: memref<128x128xf32, #tpu.memory_space<vmem>>, %arg5: memref<1x128xf32, #tpu.memory_space<vmem>>, %arg6: memref<1x128xf32, #tpu.memory_space<vmem>>, %arg7: memref<8x128xf32, #tpu.memory_space<vmem>>) attributes {dimension_semantics = [], scalar_prefetch = 0 : i64, scratch_operands = 0 : i64, tpu.core_type = #tpu.core_type<tc>} {
    %c0 = arith.constant 0 : index
    %c0_0 = arith.constant 0 : index
    %0 = vector.load %arg0[%c0, %c0_0] : memref<8x128xf32, #tpu.memory_space<vmem>>, vector<8x128xf32>
    %c0_1 = arith.constant 0 : index
    %c0_2 = arith.constant 0 : index
    %1 = vector.load %arg1[%c0_1, %c0_2] : memref<128x256xf32, #tpu.memory_space<vmem>>, vector<128x256xf32>
    %cst = arith.constant dense<0.000000e+00> : vector<8x256xf32>
    %2 = tpu.matmul %0, %1, %cst {dimension_numbers = #tpu.dot_dimension_numbers<[1], [0], [0], [1], [0, 0, 1, 1], [], []>} : vector<8x128xf32>, vector<128x256xf32>, vector<8x256xf32> -> vector<8x256xf32>
    %c0_3 = arith.constant 0 : index
    %c0_4 = arith.constant 0 : index
    %3 = vector.load %arg2[%c0_3, %c0_4] : memref<1x256xf32, #tpu.memory_space<vmem>>, vector<1x256xf32>
    %c0_5 = arith.constant 0 : index
    %c0_6 = arith.constant 0 : index
    %4 = vector.load %arg3[%c0_5, %c0_6] : memref<1x256xf32, #tpu.memory_space<vmem>>, vector<1x256xf32>
    %cst_7 = arith.constant dense<0.000000e+00> : vector<256xf32>
    %5 = vector.multi_reduction <add>, %2, %cst_7 [0] : vector<8x256xf32> to vector<256xf32>
    %6 = vector.shape_cast %5 : vector<256xf32> to vector<1x256xf32>
    %cst_8 = arith.constant 8.000000e+00 : f32
    %7 = vector.broadcast %cst_8 : f32 to vector<1x256xf32>
    %8 = arith.divf %6, %7 : vector<1x256xf32>
    %9 = vector.broadcast %8 : vector<1x256xf32> to vector<8x256xf32>
    %10 = arith.subf %2, %9 : vector<8x256xf32>
    %11 = arith.mulf %10, %10 : vector<8x256xf32>
    %cst_9 = arith.constant dense<0.000000e+00> : vector<256xf32>
    %12 = vector.multi_reduction <add>, %11, %cst_9 [0] : vector<8x256xf32> to vector<256xf32>
    %13 = vector.shape_cast %12 : vector<256xf32> to vector<1x256xf32>
    %cst_10 = arith.constant 8.000000e+00 : f32
    %14 = vector.broadcast %cst_10 : f32 to vector<1x256xf32>
    %15 = arith.divf %13, %14 : vector<1x256xf32>
    %cst_11 = arith.constant 9.99999974E-6 : f32
    %16 = vector.broadcast %cst_11 : f32 to vector<1x256xf32>
    %17 = arith.addf %15, %16 : vector<1x256xf32>
    %18 = math.rsqrt %17 : vector<1x256xf32>
    %19 = arith.mulf %3, %18 : vector<1x256xf32>
    %20 = vector.broadcast %19 : vector<1x256xf32> to vector<8x256xf32>
    %21 = arith.mulf %10, %20 : vector<8x256xf32>
    %22 = vector.broadcast %4 : vector<1x256xf32> to vector<8x256xf32>
    %23 = arith.addf %21, %22 : vector<8x256xf32>
    %24 = vector.extract_strided_slice %23 {offsets = [0, 0], sizes = [8, 128], strides = [1, 1]} : vector<8x256xf32> to vector<8x128xf32>
    %cst_12 = arith.constant 0.000000e+00 : f32
    %25 = vector.broadcast %cst_12 : f32 to vector<8x128xf32>
    %26 = arith.cmpf oge, %24, %25 : vector<8x128xf32>
    %cst_13 = arith.constant 0.00999999977 : f32
    %27 = vector.broadcast %cst_13 : f32 to vector<8x128xf32>
    %28 = arith.mulf %27, %24 : vector<8x128xf32>
    %29 = arith.select %26, %24, %28 : vector<8x128xi1>, vector<8x128xf32>
    %30 = vector.extract_strided_slice %23 {offsets = [0, 128], sizes = [8, 128], strides = [1, 1]} : vector<8x256xf32> to vector<8x128xf32>
    %c0_14 = arith.constant 0 : index
    %c0_15 = arith.constant 0 : index
    %31 = vector.load %arg4[%c0_14, %c0_15] : memref<128x128xf32, #tpu.memory_space<vmem>>, vector<128x128xf32>
    %cst_16 = arith.constant dense<0.000000e+00> : vector<8x128xf32>
    %32 = tpu.matmul %29, %31, %cst_16 {dimension_numbers = #tpu.dot_dimension_numbers<[1], [0], [0], [1], [0, 0, 1, 1], [], []>} : vector<8x128xf32>, vector<128x128xf32>, vector<8x128xf32> -> vector<8x128xf32>
    %c0_17 = arith.constant 0 : index
    %c0_18 = arith.constant 0 : index
    %33 = vector.load %arg5[%c0_17, %c0_18] : memref<1x128xf32, #tpu.memory_space<vmem>>, vector<1x128xf32>
    %c0_19 = arith.constant 0 : index
    %c0_20 = arith.constant 0 : index
    %34 = vector.load %arg6[%c0_19, %c0_20] : memref<1x128xf32, #tpu.memory_space<vmem>>, vector<1x128xf32>
    %cst_21 = arith.constant dense<0.000000e+00> : vector<128xf32>
    %35 = vector.multi_reduction <add>, %32, %cst_21 [0] : vector<8x128xf32> to vector<128xf32>
    %36 = vector.shape_cast %35 : vector<128xf32> to vector<1x128xf32>
    %cst_22 = arith.constant 8.000000e+00 : f32
    %37 = vector.broadcast %cst_22 : f32 to vector<1x128xf32>
    %38 = arith.divf %36, %37 : vector<1x128xf32>
    %39 = vector.broadcast %38 : vector<1x128xf32> to vector<8x128xf32>
    %40 = arith.subf %32, %39 : vector<8x128xf32>
    %41 = arith.mulf %40, %40 : vector<8x128xf32>
    %cst_23 = arith.constant dense<0.000000e+00> : vector<128xf32>
    %42 = vector.multi_reduction <add>, %41, %cst_23 [0] : vector<8x128xf32> to vector<128xf32>
    %43 = vector.shape_cast %42 : vector<128xf32> to vector<1x128xf32>
    %cst_24 = arith.constant 8.000000e+00 : f32
    %44 = vector.broadcast %cst_24 : f32 to vector<1x128xf32>
    %45 = arith.divf %43, %44 : vector<1x128xf32>
    %cst_25 = arith.constant 9.99999974E-6 : f32
    %46 = vector.broadcast %cst_25 : f32 to vector<1x128xf32>
    %47 = arith.addf %45, %46 : vector<1x128xf32>
    %48 = math.rsqrt %47 : vector<1x128xf32>
    %49 = arith.mulf %33, %48 : vector<1x128xf32>
    %50 = vector.broadcast %49 : vector<1x128xf32> to vector<8x128xf32>
    %51 = arith.mulf %40, %50 : vector<8x128xf32>
    %52 = vector.broadcast %34 : vector<1x128xf32> to vector<8x128xf32>
    %53 = arith.addf %51, %52 : vector<8x128xf32>
    %cst_26 = arith.constant 0.000000e+00 : f32
    %54 = vector.broadcast %cst_26 : f32 to vector<8x128xf32>
    %55 = arith.cmpf oge, %53, %54 : vector<8x128xf32>
    %cst_27 = arith.constant 0.00999999977 : f32
    %56 = vector.broadcast %cst_27 : f32 to vector<8x128xf32>
    %57 = arith.mulf %56, %53 : vector<8x128xf32>
    %58 = arith.select %55, %53, %57 : vector<8x128xi1>, vector<8x128xf32>
    %59 = arith.addf %58, %30 : vector<8x128xf32>
    %c0_28 = arith.constant 0 : index
    %c0_29 = arith.constant 0 : index
    %60 = vector.load %arg7[%c0_28, %c0_29] : memref<8x128xf32, #tpu.memory_space<vmem>>, vector<8x128xf32>
    tpu.vector_store %arg7[%c0_28, %c0_29], %59 {strides = array<i32>} : memref<8x128xf32, #tpu.memory_space<vmem>>, vector<8x128xf32>,
    return
  }
}

</mosaic_0001>

<llo_original>
// kernel: tpu_custom_call.1
$region0: #{tpu_custom_call.1}
  #allocation0 [shape = 'u32[]', space=smem, size = 0x4, offset = 0x4, fixed_abs, tag = 'smem constant byte address 0x4 - core index']
  #allocation1 [shape = 'u32[72,128]{1,0:T(1,128)}', space=vmem, size = 0x9000, scoped, tag = 'internal scratch']
  %s0 = inlined_call_operand.hbm [shape: f32[8,128], index: 0, kind: input, shape index: {}]
  %s1 = inlined_call_operand.hbm [shape: f32[128,256], index: 1, kind: input, shape index: {}]
  %s2 = inlined_call_operand.hbm [shape: f32[1,256], index: 2, kind: input, shape index: {}]
  %s3 = inlined_call_operand.vmem [shape: f32[1,256], index: 3, kind: input, shape index: {}]
  %s4 = inlined_call_operand.hbm [shape: f32[128,128], index: 4, kind: input, shape index: {}]
  %s5 = inlined_call_operand.vmem [shape: f32[1,128], index: 5, kind: input, shape index: {}]
  %s6 = inlined_call_operand.vmem [shape: f32[1,128], index: 6, kind: input, shape index: {}]
  %s7 = inlined_call_operand.hbm [shape: f32[8,128], index: 7, kind: output, shape index: {}]
  %s8 = sld [smem:[#allocation0]]
  $region54: #{tpu_custom_call.1} parent=0
    _
  %s10 = ssub.s32 1, %s8
  %s11 = scalar_select 0, %s10, %s8
  $region1: #{tpu_custom_call.1} parent=0
    #allocation2 [shape = 'u8[4096]{0}', space=vmem, size = 0x1000, scoped, tag = 'input window, operand 0, single buffered']
    #allocation3 [shape = 's32[1]{0}', space=sflag, size = 0x4, scoped, tag = 'scoped memory for tpu_custom_call.1']
    #allocation4 [shape = 's32[1]{0}', space=sflag, size = 0x4, scoped, tag = 'scoped memory for tpu_custom_call.1']
    #allocation5 [shape = 'u8[131072]{0}', space=vmem, size = 0x20000, scoped, tag = 'input window, operand 1, single buffered']
    #allocation6 [shape = 's32[1]{0}', space=sflag, size = 0x4, scoped, tag = 'scoped memory for tpu_custom_call.1']
    #allocation7 [shape = 'u8[1024]{0}', space=vmem, size = 0x400, scoped, tag = 'input window, operand 2, single buffered']
    #allocation8 [shape = 'u8[65536]{0}', space=vmem, size = 0x10000, scoped, tag = 'input window, operand 4, single buffered']
    #allocation9 [shape = 's32[1]{0}', space=sflag, size = 0x4, scoped, tag = 'scoped memory for tpu_custom_call.1']
    #allocation10 [shape = 'u8[4096]{0}', space=vmem, size = 0x1000, scoped, tag = 'output window, operand 0, single buffered']
    %12 = vsyncpa [#allocation3], 0
    %13 = vsyncpa [#allocation6], 0
    %14 = vsyncpa [#allocation9], 0
    %15 = vsyncpa [#allocation4], 0
    // Predicated region
    $region2: #{tpu_custom_call.1} parent=1 // pred_check
      _
    $region3: #{tpu_custom_call.1} parent=1 // pred_check_branch
      %17 = sbr.rel (0) target = $region5
    $region4: #{tpu_custom_call.1} parent=1 // pred_region
      %19 = vsyncadd [#allocation3], 0
      %s21 = sshll.u32 %s0, 4
      %s22 = int_to_ptr.hbm [resolvable:$true] %s21
      %s23 = sshll.u32 [#allocation2], 4
      %s24 = int_to_ptr.vmem [resolvable:$true] %s23
      %26 = dma.hbm_to_vmem [thread:$0]  %s22, 128, %s24, [#allocation3]
    $region5: #{tpu_custom_call.1} parent=1 // pred_fallthru
      _
    // Predicated region
    $region6: #{tpu_custom_call.1} parent=1 // pred_check
      _
    $region7: #{tpu_custom_call.1} parent=1 // pred_check_branch
      %28 = sbr.rel (0) target = $region9
    $region8: #{tpu_custom_call.1} parent=1 // pred_region
      %30 = vsyncadd [#allocation6], 0
      %s31 = sshll.u32 %s1, 4
      %s32 = int_to_ptr.hbm [resolvable:$true] %s31
      %s33 = sshll.u32 [#allocation5], 4
      %s34 = int_to_ptr.vmem [resolvable:$true] %s33
      %39 = dma.hbm_to_vmem [thread:$0]  %s32, 4096, %s34, [#allocation6], 256, 256, 16
    $region9: #{tpu_custom_call.1} parent=1 // pred_fallthru
      _
    // Predicated region
    $region10: #{tpu_custom_call.1} parent=1 // pred_check
      _
    $region11: #{tpu_custom_call.1} parent=1 // pred_check_branch
      %41 = sbr.rel (0) target = $region13
    $region12: #{tpu_custom_call.1} parent=1 // pred_region
      %43 = vsyncadd [#allocation6], 0
      %s45 = sshll.u32 %s2, 4
      %s46 = int_to_ptr.hbm [resolvable:$true] %s45
      %s47 = sshll.u32 [#allocation7], 4
      %s48 = int_to_ptr.vmem [resolvable:$true] %s47
      %50 = dma.hbm_to_vmem [thread:$0]  %s46, 32, %s48, [#allocation6]
    $region13: #{tpu_custom_call.1} parent=1 // pred_fallthru
      _
    // Predicated region
    $region14: #{tpu_custom_call.1} parent=1 // pred_check
      _
    $region15: #{tpu_custom_call.1} parent=1 // pred_check_branch
      %52 = sbr.rel (0) target = $region17
    $region16: #{tpu_custom_call.1} parent=1 // pred_region
      _
    $region17: #{tpu_custom_call.1} parent=1 // pred_fallthru
      _
    // Predicated region
    $region18: #{tpu_custom_call.1} parent=1 // pred_check
      _
    $region19: #{tpu_custom_call.1} parent=1 // pred_check_branch
      %54 = sbr.rel (0) target = $region21
    $region20: #{tpu_custom_call.1} parent=1 // pred_region
      %56 = vsyncadd [#allocation9], 0
      %s57 = sshll.u32 %s4, 4
      %s58 = int_to_ptr.hbm [resolvable:$true] %s57
      %s59 = sshll.u32 [#allocation8], 4
      %s60 = int_to_ptr.vmem [resolvable:$true] %s59
      %65 = dma.hbm_to_vmem [thread:$0]  %s58, 2048, %s60, [#allocation9], 128, 128, 8
    $region21: #{tpu_custom_call.1} parent=1 // pred_fallthru
      _
    // Predicated region
    $region22: #{tpu_custom_call.1} parent=1 // pred_check
      _
    $region23: #{tpu_custom_call.1} parent=1 // pred_check_branch
      %67 = sbr.rel (0) target = $region25
    $region24: #{tpu_custom_call.1} parent=1 // pred_region
      _
    $region25: #{tpu_custom_call.1} parent=1 // pred_fallthru
      _
    // Predicated region
    $region26: #{tpu_custom_call.1} parent=1 // pred_check
      _
    $region27: #{tpu_custom_call.1} parent=1 // pred_check_branch
      %69 = sbr.rel (0) target = $region29
    $region28: #{tpu_custom_call.1} parent=1 // pred_region
      _
    $region29: #{tpu_custom_call.1} parent=1 // pred_fallthru
      _
    // Predicated region
    $region30: #{tpu_custom_call.1} parent=1 // pred_check
      _
    $region31: #{tpu_custom_call.1} parent=1 // pred_check_branch
      %71 = sbr.rel (0) target = $region33
    $region32: #{tpu_custom_call.1} parent=1 // pred_region
      %73 = dma.done [#allocation3], 128
    $region33: #{tpu_custom_call.1} parent=1 // pred_fallthru
      _
    // Predicated region
    $region34: #{tpu_custom_call.1} parent=1 // pred_check
      _
    $region35: #{tpu_custom_call.1} parent=1 // pred_check_branch
      %75 = sbr.rel (0) target = $region37
    $region36: #{tpu_custom_call.1} parent=1 // pred_region
      %77 = dma.done [#allocation6], 4096
    $region37: #{tpu_custom_call.1} parent=1 // pred_fallthru
      _
    // Predicated region
    $region38: #{tpu_custom_call.1} parent=1 // pred_check
      _
    $region39: #{tpu_custom_call.1} parent=1 // pred_check_branch
      %79 = sbr.rel (0) target = $region41
    $region40: #{tpu_custom_call.1} parent=1 // pred_region
      %81 = dma.done [#allocation6], 32
    $region41: #{tpu_custom_call.1} parent=1 // pred_fallthru
      _
    // Predicated region
    $region42: #{tpu_custom_call.1} parent=1 // pred_check
      _
    $region43: #{tpu_custom_call.1} parent=1 // pred_check_branch
      %83 = sbr.rel (0) target = $region45
    $region44: #{tpu_custom_call.1} parent=1 // pred_region
      %85 = dma.done [#allocation9], 2048
    $region45: #{tpu_custom_call.1} parent=1 // pred_fallthru
      _
    %v86 = vld [vmem:[#allocation2] sm:$0xff]
    %v87 = vld [vmem:[#allocation5] sm:$0xff]
    %v88 = vld [vmem:[#allocation5 + $0x8] sm:$0xff]
    %v89 = vld [vmem:[#allocation5 + $0x10] sm:$0xff]
    %v90 = vld [vmem:[#allocation5 + $0x18] sm:$0xff]
    %v91 = vld [vmem:[#allocation5 + $0x20] sm:$0xff]
    %v92 = vld [vmem:[#allocation5 + $0x28] sm:$0xff]
    %v93 = vld [vmem:[#allocation5 + $0x30] sm:$0xff]
    %v94 = vld [vmem:[#allocation5 + $0x38] sm:$0xff]
    %v95 = vld [vmem:[#allocation5 + $0x40] sm:$0xff]
    %v96 = vld [vmem:[#allocation5 + $0x48] sm:$0xff]
    %v97 = vld [vmem:[#allocation5 + $0x50] sm:$0xff]
    %v98 = vld [vmem:[#allocation5 + $0x58] sm:$0xff]
    %v99 = vld [vmem:[#allocation5 + $0x60] sm:$0xff]
    %v100 = vld [vmem:[#allocation5 + $0x68] sm:$0xff]
    %v101 = vld [vmem:[#allocation5 + $0x70] sm:$0xff]
    %v102 = vld [vmem:[#allocation5 + $0x78] sm:$0xff]
    %v103 = vld [vmem:[#allocation5 + $0x80] sm:$0xff]
    %v104 = vld [vmem:[#allocation5 + $0x88] sm:$0xff]
    %v105 = vld [vmem:[#allocation5 + $0x90] sm:$0xff]
    %v106 = vld [vmem:[#allocation5 + $0x98] sm:$0xff]
    %v107 = vld [vmem:[#allocation5 + $0xa0] sm:$0xff]
    %v108 = vld [vmem:[#allocation5 + $0xa8] sm:$0xff]
    %v109 = vld [vmem:[#allocation5 + $0xb0] sm:$0xff]
    %v110 = vld [vmem:[#allocation5 + $0xb8] sm:$0xff]
    %v111 = vld [vmem:[#allocation5 + $0xc0] sm:$0xff]
    %v112 = vld [vmem:[#allocation5 + $0xc8] sm:$0xff]
    %v113 = vld [vmem:[#allocation5 + $0xd0] sm:$0xff]
    %v114 = vld [vmem:[#allocation5 + $0xd8] sm:$0xff]
    %v115 = vld [vmem:[#allocation5 + $0xe0] sm:$0xff]
    %v116 = vld [vmem:[#allocation5 + $0xe8] sm:$0xff]
    %v117 = vld [vmem:[#allocation5 + $0xf0] sm:$0xff]
    %v118 = vld [vmem:[#allocation5 + $0xf8] sm:$0xff]
    %119 = vmatpush.msra.mxu0 %v117
    %120 = vmatpush.msra.mxu0 %v115
    %121 = vmatpush.msra.mxu0 %v113
    %122 = vmatpush.msra.mxu0 %v111
    %123 = vmatpush.msra.mxu0 %v109
    %124 = vmatpush.msra.mxu0 %v107
    %125 = vmatpush.msra.mxu0 %v105
    %126 = vmatpush.msra.mxu0 %v103
    %127 = vmatpush.msra.mxu0 %v101
    %128 = vmatpush.msra.mxu0 %v99
    %129 = vmatpush.msra.mxu0 %v97
    %130 = vmatpush.msra.mxu0 %v95
    %131 = vmatpush.msra.mxu0 %v93
    %132 = vmatpush.msra.mxu0 %v91
    %133 = vmatpush.msra.mxu0 %v89
    %134 = vmatpush.msra.mxu0 %v87
    %135 = vmatmul.f32.gmra.mxu0 %v86
    %v136 = vpop.f32.mrf.mxu0
    %v137 = vadd.f32 0.0, %v136
    %138 = vdwg.mxu0
    %139 = vmatpush.msra.mxu0 %v118
    %140 = vmatpush.msra.mxu0 %v116
    %141 = vmatpush.msra.mxu0 %v114
    %142 = vmatpush.msra.mxu0 %v112
    %143 = vmatpush.msra.mxu0 %v110
    %144 = vmatpush.msra.mxu0 %v108
    %145 = vmatpush.msra.mxu0 %v106
    %146 = vmatpush.msra.mxu0 %v104
    %147 = vmatpush.msra.mxu0 %v102
    %148 = vmatpush.msra.mxu0 %v100
    %149 = vmatpush.msra.mxu0 %v98
    %150 = vmatpush.msra.mxu0 %v96
    %151 = vmatpush.msra.mxu0 %v94
    %152 = vmatpush.msra.mxu0 %v92
    %153 = vmatpush.msra.mxu0 %v90
    %154 = vmatpush.msra.mxu0 %v88
    %155 = vmatmul.f32.gmra.mxu0 %v86
    %v156 = vpop.f32.mrf.mxu0
    %v157 = vadd.f32 0.0, %v156
    %158 = vdwg.mxu0
    %v159 = vld [vmem:[#allocation7] sm:$0x3]
    %v160 = vld [vmem:[%s3] sm:$0x3]
    %v161 = vrot.slane %v137, 4
    %v162 = vadd.f32 %v137, %v161
    %v163 = vrot.slane %v162, 2
    %v164 = vadd.f32 %v162, %v163
    %v165 = vrot.slane %v164, 1
    %v166 = vadd.f32 %v164, %v165
    %v167 = vrot.slane %v157, 4
    %v168 = vadd.f32 %v157, %v167
    %v169 = vrot.slane %v168, 2
    %v170 = vadd.f32 %v168, %v169
    %v171 = vrot.slane %v170, 1
    %v172 = vadd.f32 %v170, %v171
    %v173 = vrcp.pop 8.0
    %v174 = vmul.f32 8.0, %v173
    %v175 = vsub.f32 1.0, %v174
    %v176 = vmul.f32 %v173, %v175
    %v177 = vadd.f32 %v173, %v176
    %vm178 = vweird.f32 %v173
    %v179 = vsel %vm178, %v173, %v177
    %v180 = vmul.f32 %v166, %v179
    %v181 = vmul.f32 %v172, %v179
    %v182 = vsub.f32 %v137, %v180
    %v183 = vsub.f32 %v157, %v181
    %v184 = vmul.f32 %v182, %v182
    %v185 = vmul.f32 %v183, %v183
    %v186 = vrot.slane %v184, 4
    %v187 = vadd.f32 %v184, %v186
    %v188 = vrot.slane %v187, 2
    %v189 = vadd.f32 %v187, %v188
    %v190 = vrot.slane %v189, 1
    %v191 = vadd.f32 %v189, %v190
    %v192 = vrot.slane %v185, 4
    %v193 = vadd.f32 %v185, %v192
    %v194 = vrot.slane %v193, 2
    %v195 = vadd.f32 %v193, %v194
    %v196 = vrot.slane %v195, 1
    %v197 = vadd.f32 %v195, %v196
    %v198 = vmul.f32 %v191, %v179
    %v199 = vmul.f32 %v197, %v179
    %v200 = vadd.f32 %v198, 1e-05
    %v201 = vadd.f32 %v199, 1e-05
    %v202 = vrsqrt.pop %v200
    %v203 = vmul.f32 %v202, %v200
    %v204 = vmul.f32 %v203, %v202
    %v205 = vmul.f32 0.5, %v204
    %v206 = vsub.f32 1.5, %v205
    %v207 = vmul.f32 %v202, %v206
    %vm208 = vweird.f32 %v200
    %vm209 = vweird.f32 %v202
    %vm210 = vmor %vm208, %vm209
    %v211 = vsel %vm210, %v202, %v207
    %v212 = vrsqrt.pop %v201
    %v213 = vmul.f32 %v212, %v201
    %v214 = vmul.f32 %v213, %v212
    %v215 = vmul.f32 0.5, %v214
    %v216 = vsub.f32 1.5, %v215
    %v217 = vmul.f32 %v212, %v216
    %vm218 = vweird.f32 %v201
    %vm219 = vweird.f32 %v212
    %vm220 = vmor %vm218, %vm219
    %v221 = vsel %vm220, %v212, %v217
    %v224 = vrot.slane %v221, 7
    %vm225 = vcmask 1040384
    %v226 = vsel %vm225, %v211, %v224
    %v228 = vmul.f32 %v159, %v226
    %v230 = vperm.slane %v228, 0
    %v231 = vperm.slane %v228, 1
    %v234 = vmul.f32 %v182, %v230
    %v235 = vmul.f32 %v183, %v231
    %v237 = vperm.slane %v160, 0
    %v238 = vperm.slane %v160, 1
    %v241 = vadd.f32 %v234, %v237
    %v242 = vadd.f32 %v235, %v238
    %vm243 = vcmp.ge.f32.partialorder %v241, 0.0
    %v244 = vmul.f32 %v241, 0.01
    %v245 = vsel %vm243, %v241, %v244
    %v246 = vld [vmem:[#allocation8] sm:$0xff]
    %v247 = vld [vmem:[#allocation8 + $0x8] sm:$0xff]
    %v248 = vld [vmem:[#allocation8 + $0x10] sm:$0xff]
    %v249 = vld [vmem:[#allocation8 + $0x18] sm:$0xff]
    %v250 = vld [vmem:[#allocation8 + $0x20] sm:$0xff]
    %v251 = vld [vmem:[#allocation8 + $0x28] sm:$0xff]
    %v252 = vld [vmem:[#allocation8 + $0x30] sm:$0xff]
    %v253 = vld [vmem:[#allocation8 + $0x38] sm:$0xff]
    %v254 = vld [vmem:[#allocation8 + $0x40] sm:$0xff]
    %v255 = vld [vmem:[#allocation8 + $0x48] sm:$0xff]
    %v256 = vld [vmem:[#allocation8 + $0x50] sm:$0xff]
    %v257 = vld [vmem:[#allocation8 + $0x58] sm:$0xff]
    %v258 = vld [vmem:[#allocation8 + $0x60] sm:$0xff]
    %v259 = vld [vmem:[#allocation8 + $0x68] sm:$0xff]
    %v260 = vld [vmem:[#allocation8 + $0x70] sm:$0xff]
    %v261 = vld [vmem:[#allocation8 + $0x78] sm:$0xff]
    %262 = vmatpush.msra.mxu0 %v261
    %263 = vmatpush.msra.mxu0 %v260
    %264 = vmatpush.msra.mxu0 %v259
    %265 = vmatpush.msra.mxu0 %v258
    %266 = vmatpush.msra.mxu0 %v257
    %267 = vmatpush.msra.mxu0 %v256
    %268 = vmatpush.msra.mxu0 %v255
    %269 = vmatpush.msra.mxu0 %v254
    %270 = vmatpush.msra.mxu0 %v253
    %271 = vmatpush.msra.mxu0 %v252
    %272 = vmatpush.msra.mxu0 %v251
    %273 = vmatpush.msra.mxu0 %v250
    %274 = vmatpush.msra.mxu0 %v249
    %275 = vmatpush.msra.mxu0 %v248
    %276 = vmatpush.msra.mxu0 %v247
    %277 = vmatpush.msra.mxu0 %v246
    %278 = vmatmul.f32.gmra.mxu0 %v245
    %v279 = vpop.f32.mrf.mxu0
    %v280 = vadd.f32 0.0, %v279
    %281 = vdwg.mxu0
    %v282 = vld [vmem:[%s5] sm:$0x1]
    %v283 = vld [vmem:[%s6] sm:$0x1]
    %v284 = vrot.slane %v280, 4
    %v285 = vadd.f32 %v280, %v284
    %v286 = vrot.slane %v285, 2
    %v287 = vadd.f32 %v285, %v286
    %v288 = vrot.slane %v287, 1
    %v289 = vadd.f32 %v287, %v288
    %v290 = vmul.f32 %v289, %v179
    %v291 = vsub.f32 %v280, %v290
    %v292 = vmul.f32 %v291, %v291
    %v293 = vrot.slane %v292, 4
    %v294 = vadd.f32 %v292, %v293
    %v295 = vrot.slane %v294, 2
    %v296 = vadd.f32 %v294, %v295
    %v297 = vrot.slane %v296, 1
    %v298 = vadd.f32 %v296, %v297
    %v299 = vmul.f32 %v298, %v179
    %v300 = vadd.f32 %v299, 1e-05
    %v301 = vrsqrt.pop %v300
    %v302 = vmul.f32 %v301, %v300
    %v303 = vmul.f32 %v302, %v301
    %v304 = vmul.f32 0.5, %v303
    %v305 = vsub.f32 1.5, %v304
    %v306 = vmul.f32 %v301, %v305
    %vm307 = vweird.f32 %v300
    %vm308 = vweird.f32 %v301
    %vm309 = vmor %vm307, %vm308
    %v310 = vsel %vm309, %v301, %v306
    %v311 = vmul.f32 %v282, %v310
    %v313 = vperm.slane %v311, 0
    %v315 = vmul.f32 %v291, %v313
    %v317 = vperm.slane %v283, 0
    %v319 = vadd.f32 %v315, %v317
    %vm320 = vcmp.ge.f32.partialorder %v319, 0.0
    %v321 = vmul.f32 %v319, 0.01
    %v322 = vsel %vm320, %v319, %v321
    %v323 = vadd.f32 %v322, %v242
    %324 = vst [vmem:[#allocation10] sm:$0xff] %v323
    // Predicated region
    $region46: #{tpu_custom_call.1} parent=1 // pred_check
      _
    $region47: #{tpu_custom_call.1} parent=1 // pred_check_branch
      %326 = sbr.rel (0) target = $region49
    $region48: #{tpu_custom_call.1} parent=1 // pred_region
      %328 = vsyncadd [#allocation4], 0
      %s330 = sshll.u32 [#allocation10], 4
      %s331 = int_to_ptr.vmem [resolvable:$true] %s330
      %s332 = sshll.u32 %s7, 4
      %s333 = int_to_ptr.hbm [resolvable:$true] %s332
      %335 = dma.vmem_to_hbm [thread:$0]  %s331, 128, %s333, [#allocation4]
    $region49: #{tpu_custom_call.1} parent=1 // pred_fallthru
      _
    // Predicated region
    $region50: #{tpu_custom_call.1} parent=1 // pred_check
      _
    $region51: #{tpu_custom_call.1} parent=1 // pred_check_branch
      %337 = sbr.rel (0) target = $region53
    $region52: #{tpu_custom_call.1} parent=1 // pred_region
      %339 = dma.done [#allocation4], 128
    $region53: #{tpu_custom_call.1} parent=1 // pred_fallthru
      _
    %340 = vsyncpa [#allocation3], 1
    %341 = vsyncpa [#allocation6], 1
    %342 = vsyncpa [#allocation9], 1
    %343 = vsyncpa [#allocation4], 1

</llo_original>
